<compile_context>
chip_gen: v6e
topology: v6e:2x2x1
jax: 0.10.0
libtpu: 0.0.40
codegen_flags: <defaults>
</compile_context>

<pallas_src>
import jax
import jax.numpy as jnp
from jax.experimental import pallas as pl
from jax.experimental.pallas import tpu as pltpu

LANE = 128  # lane-dense padding width for the classifier output


def gnn_kernel(a_ref, x_ref,
               w1_ref, b1_ref,
               w2_ref, b2_ref,
               wc_ref, bc_ref,
               out_ref):
    a = a_ref[...]          # [N, N]   bf16 dense adjacency (j -> i), multi-edge counts
    x = x_ref[...]          # [N, Fin] bf16 node features

    # ---- conv1 (GraphConv) + ReLU: fused rel/root matmul ----
    agg1 = jnp.dot(a, x, preferred_element_type=jnp.float32)              # [N, Fin] f32
    cat1 = jnp.concatenate([agg1.astype(jnp.bfloat16), x], axis=-1)       # [N, 2*Fin]
    h1 = jnp.dot(cat1, w1_ref[...], preferred_element_type=jnp.float32) + b1_ref[...]
    h1 = jnp.maximum(h1, 0.0)                                             # relu in f32
    h1_b = h1.astype(jnp.bfloat16)

    # ---- conv2 (GraphConv): fused rel/root matmul ----
    agg2 = jnp.dot(a, h1_b, preferred_element_type=jnp.float32)           # [N, H] f32
    cat2 = jnp.concatenate([agg2.astype(jnp.bfloat16), h1_b], axis=-1)    # [N, 2*H]
    h2 = jnp.dot(cat2, w2_ref[...], preferred_element_type=jnp.float32) + b2_ref[...]

    # ---- classifier (nn.Linear), lane-padded to 128 output columns ----
    out = jnp.dot(h2.astype(jnp.bfloat16), wc_ref[...],
                  preferred_element_type=jnp.float32) + bc_ref[...]
    out_ref[...] = out.astype(out_ref.dtype)


def gnn_forward(a_dense, x, params):
    (w1r, w1s, b1, w2r, w2s, b2, wc, bc) = params
    n_nodes = x.shape[0]
    n_classes = wc.shape[1]

    # Fuse rel/root weights: [agg | h] @ [[W_rel],[W_root]]
    w1 = jnp.concatenate([w1r, w1s], axis=0).astype(jnp.bfloat16)   # [2*Fin, H]
    w2 = jnp.concatenate([w2r, w2s], axis=0).astype(jnp.bfloat16)   # [2*H,  H]

    # Lane-dense classifier: zero-pad output dim to 128
    wc_p = (jnp.zeros((wc.shape[0], LANE), jnp.float32)
            .at[:, :n_classes].set(wc)).astype(jnp.bfloat16)
    bc_p = jnp.zeros((1, LANE), jnp.float32).at[:, :n_classes].set(bc)

    a_b = a_dense.astype(jnp.bfloat16)  # small-integer counts: lossless in bf16
    x_b = x.astype(jnp.bfloat16)

    vmem = pl.BlockSpec(memory_space=pltpu.MemorySpace.VMEM)
    out_padded = pl.pallas_call(
        gnn_kernel,
        out_shape=jax.ShapeDtypeStruct((n_nodes, LANE), jnp.float32),
        in_specs=[vmem] * 8,
        out_specs=vmem,
    )(a_b, x_b, w1, b1, w2, b2, wc_p, bc_p)
    return out_padded[:, :n_classes]


def reference_forward(a_dense, x, params):
    """Pure-JAX reference with the same bf16 operand quantization as the kernel."""
    (w1r, w1s, b1, w2r, w2s, b2, wc, bc) = params
    bf = lambda t: t.astype(jnp.bfloat16).astype(jnp.float32)
    a = bf(a_dense)
    xb = bf(x)
    agg1 = a @ xb
    h1 = jnp.maximum(bf(agg1) @ bf(w1r) + xb @ bf(w1s) + b1, 0.0)
    h1b = bf(h1)
    agg2 = a @ h1b
    h2 = bf(agg2) @ bf(w2r) + h1b @ bf(w2s) + b2
    return bf(h2) @ bf(wc) + bc


if __name__ == "__main__":
    # Small, deterministic problem sizes.
    N = 128          # nodes
    E = 512          # edges
    IN_DIM = 32
    HIDDEN = 64
    N_CLASSES = 8

    key = jax.random.PRNGKey(0)
    k_x, k_e, k1, k2, k3, k4, k5, k6 = jax.random.split(key, 8)

    # Node features and random edge_index [2, E] (src row 0, dst row 1).
    x = jax.random.normal(k_x, (N, IN_DIM), dtype=jnp.float32)
    edge_index = jax.random.randint(k_e, (2, E), 0, N, dtype=jnp.int32)

    # Densify the sparse graph. .add(1.0) counts duplicate edges, matching
    # PyG GraphConv(aggr='add') message passing on a raw edge_index.
    a_dense = (jnp.zeros((N, N), dtype=jnp.float32)
               .at[edge_index[1], edge_index[0]].add(1.0))

    # Deterministic parameter init (shapes implied by GraphConv / Linear in __init__).
    # TODO(synk): PyTorch default init is uniform(-1/sqrt(fan_in), ...); this normal
    # init is deterministic stand-in, not a kernel-math difference.
    def init_w(k, shape, fan_in):
        return (jax.random.normal(k, shape, dtype=jnp.float32)
                / jnp.sqrt(fan_in)).astype(jnp.float32)

    w1r = init_w(k1, (IN_DIM, HIDDEN), IN_DIM)       # conv1.lin_rel.weight^T
    w1s = init_w(k2, (IN_DIM, HIDDEN), IN_DIM)       # conv1.lin_root.weight^T
    b1 = jnp.zeros((1, HIDDEN), dtype=jnp.float32)   # conv1.lin_rel.bias
    w2r = init_w(k3, (HIDDEN, HIDDEN), HIDDEN)       # conv2.lin_rel.weight^T
    w2s = init_w(k4, (HIDDEN, HIDDEN), HIDDEN)       # conv2.lin_root.weight^T
    b2 = jnp.zeros((1, HIDDEN), dtype=jnp.float32)   # conv2.lin_rel.bias
    wc = init_w(k5, (HIDDEN, N_CLASSES), HIDDEN)     # classify.weight^T
    bc = init_w(k6, (1, N_CLASSES), HIDDEN)          # classify.bias

    params = (w1r, w1s, b1, w2r, w2s, b2, wc, bc)

    out = gnn_forward(a_dense, x, params)
    out = jax.block_until_ready(out)

    ref = reference_forward(a_dense, x, params)
    assert out.shape == (N, N_CLASSES)
    assert jnp.allclose(out, ref, atol=2e-3, rtol=2e-3), float(jnp.max(jnp.abs(out - ref)))

    print("KERNEL_OK")
</pallas_src>

<mosaic_0001>
module attributes {stable_mosaic.version = 11 : i64} {
  func.func @gnn_kernel(%arg0: memref<128x128xbf16, #tpu.memory_space<vmem>>, %arg1: memref<128x32xbf16, #tpu.memory_space<vmem>>, %arg2: memref<64x64xbf16, #tpu.memory_space<vmem>>, %arg3: memref<1x64xf32, #tpu.memory_space<vmem>>, %arg4: memref<128x64xbf16, #tpu.memory_space<vmem>>, %arg5: memref<1x64xf32, #tpu.memory_space<vmem>>, %arg6: memref<64x128xbf16, #tpu.memory_space<vmem>>, %arg7: memref<1x128xf32, #tpu.memory_space<vmem>>, %arg8: memref<128x128xf32, #tpu.memory_space<vmem>>) attributes {dimension_semantics = [], scalar_prefetch = 0 : i64, scratch_operands = 0 : i64, tpu.core_type = #tpu.core_type<tc>} {
    %c0 = arith.constant 0 : index
    %c0_0 = arith.constant 0 : index
    %0 = vector.load %arg0[%c0, %c0_0] : memref<128x128xbf16, #tpu.memory_space<vmem>>, vector<128x128xbf16>
    %c0_1 = arith.constant 0 : index
    %c0_2 = arith.constant 0 : index
    %1 = vector.load %arg1[%c0_1, %c0_2] : memref<128x32xbf16, #tpu.memory_space<vmem>>, vector<128x32xbf16>
    %cst = arith.constant dense<0.000000e+00> : vector<128x32xf32>
    %2 = tpu.matmul %0, %1, %cst {dimension_numbers = #tpu.dot_dimension_numbers<[1], [0], [0], [1], [0, 0, 1, 1], [], []>} : vector<128x128xbf16>, vector<128x32xbf16>, vector<128x32xf32> -> vector<128x32xf32>
    %3 = arith.truncf %2 : vector<128x32xf32> to vector<128x32xbf16>
    %4 = tpu.concatenate %3, %1 in 1 : vector<128x32xbf16>, vector<128x32xbf16> -> vector<128x64xbf16>
    %c0_3 = arith.constant 0 : index
    %c0_4 = arith.constant 0 : index
    %5 = vector.load %arg2[%c0_3, %c0_4] : memref<64x64xbf16, #tpu.memory_space<vmem>>, vector<64x64xbf16>
    %cst_5 = arith.constant dense<0.000000e+00> : vector<128x64xf32>
    %6 = tpu.matmul %4, %5, %cst_5 {dimension_numbers = #tpu.dot_dimension_numbers<[1], [0], [0], [1], [0, 0, 1, 1], [], []>} : vector<128x64xbf16>, vector<64x64xbf16>, vector<128x64xf32> -> vector<128x64xf32>
    %c0_6 = arith.constant 0 : index
    %c0_7 = arith.constant 0 : index
    %7 = vector.load %arg3[%c0_6, %c0_7] : memref<1x64xf32, #tpu.memory_space<vmem>>, vector<1x64xf32>
    %8 = vector.broadcast %7 : vector<1x64xf32> to vector<128x64xf32>
    %9 = arith.addf %6, %8 : vector<128x64xf32>
    %cst_8 = arith.constant 0.000000e+00 : f32
    %10 = vector.broadcast %cst_8 : f32 to vector<128x64xf32>
    %11 = arith.maximumf %9, %10 : vector<128x64xf32>
    %12 = arith.truncf %11 : vector<128x64xf32> to vector<128x64xbf16>
    %cst_9 = arith.constant dense<0.000000e+00> : vector<128x64xf32>
    %13 = tpu.matmul %0, %12, %cst_9 {dimension_numbers = #tpu.dot_dimension_numbers<[1], [0], [0], [1], [0, 0, 1, 1], [], []>} : vector<128x128xbf16>, vector<128x64xbf16>, vector<128x64xf32> -> vector<128x64xf32>
    %14 = arith.truncf %13 : vector<128x64xf32> to vector<128x64xbf16>
    %15 = tpu.concatenate %14, %12 in 1 : vector<128x64xbf16>, vector<128x64xbf16> -> vector<128x128xbf16>
    %c0_10 = arith.constant 0 : index
    %c0_11 = arith.constant 0 : index
    %16 = vector.load %arg4[%c0_10, %c0_11] : memref<128x64xbf16, #tpu.memory_space<vmem>>, vector<128x64xbf16>
    %cst_12 = arith.constant dense<0.000000e+00> : vector<128x64xf32>
    %17 = tpu.matmul %15, %16, %cst_12 {dimension_numbers = #tpu.dot_dimension_numbers<[1], [0], [0], [1], [0, 0, 1, 1], [], []>} : vector<128x128xbf16>, vector<128x64xbf16>, vector<128x64xf32> -> vector<128x64xf32>
    %c0_13 = arith.constant 0 : index
    %c0_14 = arith.constant 0 : index
    %18 = vector.load %arg5[%c0_13, %c0_14] : memref<1x64xf32, #tpu.memory_space<vmem>>, vector<1x64xf32>
    %19 = vector.broadcast %18 : vector<1x64xf32> to vector<128x64xf32>
    %20 = arith.addf %17, %19 : vector<128x64xf32>
    %21 = arith.truncf %20 : vector<128x64xf32> to vector<128x64xbf16>
    %c0_15 = arith.constant 0 : index
    %c0_16 = arith.constant 0 : index
    %22 = vector.load %arg6[%c0_15, %c0_16] : memref<64x128xbf16, #tpu.memory_space<vmem>>, vector<64x128xbf16>
    %cst_17 = arith.constant dense<0.000000e+00> : vector<128x128xf32>
    %23 = tpu.matmul %21, %22, %cst_17 {dimension_numbers = #tpu.dot_dimension_numbers<[1], [0], [0], [1], [0, 0, 1, 1], [], []>} : vector<128x64xbf16>, vector<64x128xbf16>, vector<128x128xf32> -> vector<128x128xf32>
    %c0_18 = arith.constant 0 : index
    %c0_19 = arith.constant 0 : index
    %24 = vector.load %arg7[%c0_18, %c0_19] : memref<1x128xf32, #tpu.memory_space<vmem>>, vector<1x128xf32>
    %25 = vector.broadcast %24 : vector<1x128xf32> to vector<128x128xf32>
    %26 = arith.addf %23, %25 : vector<128x128xf32>
    %c0_20 = arith.constant 0 : index
    %c0_21 = arith.constant 0 : index
    %27 = vector.load %arg8[%c0_20, %c0_21] : memref<128x128xf32, #tpu.memory_space<vmem>>, vector<128x128xf32>
    tpu.vector_store %arg8[%c0_20, %c0_21], %26 {strides = array<i32>} : memref<128x128xf32, #tpu.memory_space<vmem>>, vector<128x128xf32>,
    return
  }
}

</mosaic_0001>

<llo_original>
// kernel: tpu_custom_call.1
$region0: #{tpu_custom_call.1}
  #allocation0 [shape = 'u32[]', space=smem, size = 0x4, offset = 0x4, fixed_abs, tag = 'smem constant byte address 0x4 - core index']
  #allocation1 [shape = 'u32[144,128]{1,0:T(1,128)}', space=vmem, size = 0x12000, scoped, tag = 'internal scratch']
  %s0 = inlined_call_operand.vmem [shape: bf16[128,128], index: 0, kind: input, shape index: {}]
  %s1 = inlined_call_operand.vmem [shape: bf16[128,32], index: 1, kind: input, shape index: {}]
  %s2 = inlined_call_operand.vmem [shape: bf16[64,64], index: 2, kind: input, shape index: {}]
  %s3 = inlined_call_operand.vmem [shape: f32[1,64], index: 3, kind: input, shape index: {}]
  %s4 = inlined_call_operand.vmem [shape: bf16[128,64], index: 4, kind: input, shape index: {}]
  %s5 = inlined_call_operand.vmem [shape: f32[1,64], index: 5, kind: input, shape index: {}]
  %s6 = inlined_call_operand.vmem [shape: bf16[64,128], index: 6, kind: input, shape index: {}]
  %s7 = inlined_call_operand.vmem [shape: f32[1,128], index: 7, kind: input, shape index: {}]
  %s8 = inlined_call_operand.hbm [shape: f32[128,128], index: 8, kind: output, shape index: {}]
  %s9 = sld [smem:[#allocation0]]
  $region42: #{tpu_custom_call.1} parent=0
    _
  %s11 = ssub.s32 1, %s9
  %s12 = scalar_select 0, %s11, %s9
  $region1: #{tpu_custom_call.1} parent=0
    #allocation2 [shape = 'u8[65536]{0}', space=vmem, size = 0x10000, scoped, tag = 'output window, operand 0, single buffered']
    #allocation3 [shape = 's32[1]{0}', space=sflag, size = 0x4, scoped, tag = 'scoped memory for tpu_custom_call.1']
    %13 = vsyncpa [#allocation3], 0
    // Predicated region
    $region2: #{tpu_custom_call.1} parent=1 // pred_check
      _
    $region3: #{tpu_custom_call.1} parent=1 // pred_check_branch
      %15 = sbr.rel (0) target = $region5
    $region4: #{tpu_custom_call.1} parent=1 // pred_region
      _
    $region5: #{tpu_custom_call.1} parent=1 // pred_fallthru
      _
    // Predicated region
    $region6: #{tpu_custom_call.1} parent=1 // pred_check
      _
    $region7: #{tpu_custom_call.1} parent=1 // pred_check_branch
      %17 = sbr.rel (0) target = $region9
    $region8: #{tpu_custom_call.1} parent=1 // pred_region
      _
    $region9: #{tpu_custom_call.1} parent=1 // pred_fallthru
      _
    // Predicated region
    $region10: #{tpu_custom_call.1} parent=1 // pred_check
      _
    $region11: #{tpu_custom_call.1} parent=1 // pred_check_branch
      %19 = sbr.rel (0) target = $region13
    $region12: #{tpu_custom_call.1} parent=1 // pred_region
      _
    $region13: #{tpu_custom_call.1} parent=1 // pred_fallthru
      _
    // Predicated region
    $region14: #{tpu_custom_call.1} parent=1 // pred_check
      _
    $region15: #{tpu_custom_call.1} parent=1 // pred_check_branch
      %21 = sbr.rel (0) target = $region17
    $region16: #{tpu_custom_call.1} parent=1 // pred_region
      _
    $region17: #{tpu_custom_call.1} parent=1 // pred_fallthru
      _
    // Predicated region
    $region18: #{tpu_custom_call.1} parent=1 // pred_check
      _
    $region19: #{tpu_custom_call.1} parent=1 // pred_check_branch
      %23 = sbr.rel (0) target = $region21
    $region20: #{tpu_custom_call.1} parent=1 // pred_region
      _
    $region21: #{tpu_custom_call.1} parent=1 // pred_fallthru
      _
    // Predicated region
    $region22: #{tpu_custom_call.1} parent=1 // pred_check
      _
    $region23: #{tpu_custom_call.1} parent=1 // pred_check_branch
      %25 = sbr.rel (0) target = $region25
    $region24: #{tpu_custom_call.1} parent=1 // pred_region
      _
    $region25: #{tpu_custom_call.1} parent=1 // pred_fallthru
      _
    // Predicated region
    $region26: #{tpu_custom_call.1} parent=1 // pred_check
      _
    $region27: #{tpu_custom_call.1} parent=1 // pred_check_branch
      %27 = sbr.rel (0) target = $region29
    $region28: #{tpu_custom_call.1} parent=1 // pred_region
      _
    $region29: #{tpu_custom_call.1} parent=1 // pred_fallthru
      _
    // Predicated region
    $region30: #{tpu_custom_call.1} parent=1 // pred_check
      _
    $region31: #{tpu_custom_call.1} parent=1 // pred_check_branch
      %29 = sbr.rel (0) target = $region33
    $region32: #{tpu_custom_call.1} parent=1 // pred_region
      _
    $region33: #{tpu_custom_call.1} parent=1 // pred_fallthru
      _
    %v31 = vld [vmem:[%s0] sm:$0xf]
    %v32 = vld [vmem:[%s0 + $0x4] sm:$0xf]
    %v33 = vld [vmem:[%s0 + $0x8] sm:$0xf]
    %v34 = vld [vmem:[%s0 + $0xc] sm:$0xf]
    %v35 = vld [vmem:[%s0 + $0x10] sm:$0xf]
    %v36 = vld [vmem:[%s0 + $0x14] sm:$0xf]
    %v37 = vld [vmem:[%s0 + $0x18] sm:$0xf]
    %v38 = vld [vmem:[%s0 + $0x1c] sm:$0xf]
    %v39 = vld [vmem:[%s0 + $0x20] sm:$0xf]
    %v40 = vld [vmem:[%s0 + $0x24] sm:$0xf]
    %v41 = vld [vmem:[%s0 + $0x28] sm:$0xf]
    %v42 = vld [vmem:[%s0 + $0x2c] sm:$0xf]
    %v43 = vld [vmem:[%s0 + $0x30] sm:$0xf]
    %v44 = vld [vmem:[%s0 + $0x34] sm:$0xf]
    %v45 = vld [vmem:[%s0 + $0x38] sm:$0xf]
    %v46 = vld [vmem:[%s0 + $0x3c] sm:$0xf]
    %v47 = vld [vmem:[%s1] sm:$0xf]
    %v48 = vld [vmem:[%s1 + $0x4] sm:$0xf]
    %v49 = vld [vmem:[%s1 + $0x8] sm:$0xf]
    %v50 = vld [vmem:[%s1 + $0xc] sm:$0xf]
    %v51 = vld [vmem:[%s1 + $0x10] sm:$0xf]
    %v52 = vld [vmem:[%s1 + $0x14] sm:$0xf]
    %v53 = vld [vmem:[%s1 + $0x18] sm:$0xf]
    %v54 = vld [vmem:[%s1 + $0x1c] sm:$0xf]
    %v55 = vld [vmem:[%s1 + $0x20] sm:$0xf]
    %v56 = vld [vmem:[%s1 + $0x24] sm:$0xf]
    %v57 = vld [vmem:[%s1 + $0x28] sm:$0xf]
    %v58 = vld [vmem:[%s1 + $0x2c] sm:$0xf]
    %v59 = vld [vmem:[%s1 + $0x30] sm:$0xf]
    %v60 = vld [vmem:[%s1 + $0x34] sm:$0xf]
    %v61 = vld [vmem:[%s1 + $0x38] sm:$0xf]
    %v62 = vld [vmem:[%s1 + $0x3c] sm:$0xf]
    %v79 = vunpack.c.l.b16 %v31
    %v80 = vunpack.c.l.b16 %v32
    %v81 = vunpack.c.l.b16 %v33
    %v82 = vunpack.c.l.b16 %v34
    %v83 = vunpack.c.l.b16 %v35
    %v84 = vunpack.c.l.b16 %v36
    %v85 = vunpack.c.l.b16 %v37
    %v86 = vunpack.c.l.b16 %v38
    %v87 = vunpack.c.l.b16 %v39
    %v88 = vunpack.c.l.b16 %v40
    %v89 = vunpack.c.l.b16 %v41
    %v90 = vunpack.c.l.b16 %v42
    %v91 = vunpack.c.l.b16 %v43
    %v92 = vunpack.c.l.b16 %v44
    %v93 = vunpack.c.l.b16 %v45
    %v94 = vunpack.c.l.b16 %v46
    %v95 = vpack.c.b16 %v80, %v79
    %v96 = vpack.c.b16 %v82, %v81
    %v97 = vpack.c.b16 %v84, %v83
    %v98 = vpack.c.b16 %v86, %v85
    %v99 = vpack.c.b16 %v88, %v87
    %v100 = vpack.c.b16 %v90, %v89
    %v101 = vpack.c.b16 %v92, %v91
    %v102 = vpack.c.b16 %v94, %v93
    %v127 = vunpack.c.l.b16 %v47
    %v128 = vunpack.c.l.b16 %v48
    %v129 = vunpack.c.l.b16 %v49
    %v130 = vunpack.c.l.b16 %v50
    %v131 = vunpack.c.l.b16 %v51
    %v132 = vunpack.c.l.b16 %v52
    %v133 = vunpack.c.l.b16 %v53
    %v134 = vunpack.c.l.b16 %v54
    %v135 = vunpack.c.l.b16 %v55
    %v136 = vunpack.c.l.b16 %v56
    %v137 = vunpack.c.l.b16 %v57
    %v138 = vunpack.c.l.b16 %v58
    %v139 = vunpack.c.l.b16 %v59
    %v140 = vunpack.c.l.b16 %v60
    %v141 = vunpack.c.l.b16 %v61
    %v142 = vunpack.c.l.b16 %v62
    %v143 = vpack.c.b16 %v128, %v127
    %v144 = vpack.c.b16 %v130, %v129
    %v145 = vpack.c.b16 %v132, %v131
    %v146 = vpack.c.b16 %v134, %v133
    %v147 = vpack.c.b16 %v136, %v135
    %v148 = vpack.c.b16 %v138, %v137
    %v149 = vpack.c.b16 %v140, %v139
    %v150 = vpack.c.b16 %v142, %v141
    %159 = vmatprep.subr.bf16.mxu0 0
    %160 = vmatpush1.bf16.msra.mxu0 %v150
    %161 = vmatprep.subr.bf16.mxu0 0
    %162 = vmatpush1.bf16.msra.mxu0 %v149
    %163 = vmatprep.subr.bf16.mxu0 0
    %164 = vmatpush1.bf16.msra.mxu0 %v148
    %165 = vmatprep.subr.bf16.mxu0 0
    %166 = vmatpush1.bf16.msra.mxu0 %v147
    %167 = vmatprep.subr.bf16.mxu0 0
    %168 = vmatpush1.bf16.msra.mxu0 %v146
    %169 = vmatprep.subr.bf16.mxu0 0
    %170 = vmatpush1.bf16.msra.mxu0 %v145
    %171 = vmatprep.subr.bf16.mxu0 0
    %172 = vmatpush1.bf16.msra.mxu0 %v144
    %173 = vmatprep.subr.bf16.mxu0 0
    %174 = vmatpush1.bf16.msra.mxu0 %v143
    %175 = vmatprep.subr.bf16.mxu0 0
    %176 = vmatpush2.bf16.msra.mxu0 0
    %177 = vmatprep.subr.bf16.mxu0 0
    %178 = vmatpush2.bf16.msra.mxu0 0
    %179 = vmatprep.subr.bf16.mxu0 0
    %180 = vmatpush2.bf16.msra.mxu0 0
    %181 = vmatprep.subr.bf16.mxu0 0
    %182 = vmatpush2.bf16.msra.mxu0 0
    %183 = vmatprep.subr.bf16.mxu0 0
    %184 = vmatpush2.bf16.msra.mxu0 0
    %185 = vmatprep.subr.bf16.mxu0 0
    %186 = vmatpush2.bf16.msra.mxu0 0
    %187 = vmatprep.subr.bf16.mxu0 0
    %188 = vmatpush2.bf16.msra.mxu0 0
    %189 = vmatprep.subr.bf16.mxu0 0
    %190 = vmatpush2.bf16.msra.mxu0 0
    %191 = vmatprep.mubr.bf16.mxu0 0
    %192 = vmatmul.mubr.bf16.gmra.mxu0 %v95
    %v193 = vpop.f32.mrf.mxu0
    %v194 = vadd.f32 0.0, %v193
    %v195 = vpop.f32.mrf.mxu0
    %v196 = vpop.f32.mrf.mxu0
    %v197 = vadd.f32 0.0, %v196
    %v198 = vpop.f32.mrf.mxu0
    %199 = vmatprep.mubr.bf16.mxu0 0
    %200 = vmatmul.mubr.bf16.gmra.mxu0 %v96
    %v201 = vpop.f32.mrf.mxu0
    %v202 = vadd.f32 0.0, %v201
    %v203 = vpop.f32.mrf.mxu0
    %v204 = vpop.f32.mrf.mxu0
    %v205 = vadd.f32 0.0, %v204
    %v206 = vpop.f32.mrf.mxu0
    %207 = vmatprep.mubr.bf16.mxu0 0
    %208 = vmatmul.mubr.bf16.gmra.mxu0 %v97
    %v209 = vpop.f32.mrf.mxu0
    %v210 = vadd.f32 0.0, %v209
    %v211 = vpop.f32.mrf.mxu0
    %v212 = vpop.f32.mrf.mxu0
    %v213 = vadd.f32 0.0, %v212
    %v214 = vpop.f32.mrf.mxu0
    %215 = vmatprep.mubr.bf16.mxu0 0
    %216 = vmatmul.mubr.bf16.gmra.mxu0 %v98
    %v217 = vpop.f32.mrf.mxu0
    %v218 = vadd.f32 0.0, %v217
    %v219 = vpop.f32.mrf.mxu0
    %v220 = vpop.f32.mrf.mxu0
    %v221 = vadd.f32 0.0, %v220
    %v222 = vpop.f32.mrf.mxu0
    %223 = vmatprep.mubr.bf16.mxu0 0
    %224 = vmatmul.mubr.bf16.gmra.mxu0 %v99
    %v225 = vpop.f32.mrf.mxu0
    %v226 = vadd.f32 0.0, %v225
    %v227 = vpop.f32.mrf.mxu0
    %v228 = vpop.f32.mrf.mxu0
    %v229 = vadd.f32 0.0, %v228
    %v230 = vpop.f32.mrf.mxu0
    %231 = vmatprep.mubr.bf16.mxu0 0
    %232 = vmatmul.mubr.bf16.gmra.mxu0 %v100
    %v233 = vpop.f32.mrf.mxu0
    %v234 = vadd.f32 0.0, %v233
    %v235 = vpop.f32.mrf.mxu0
    %v236 = vpop.f32.mrf.mxu0
    %v237 = vadd.f32 0.0, %v236
    %v238 = vpop.f32.mrf.mxu0
    %239 = vmatprep.mubr.bf16.mxu0 0
    %240 = vmatmul.mubr.bf16.gmra.mxu0 %v101
    %v241 = vpop.f32.mrf.mxu0
    %v242 = vadd.f32 0.0, %v241
    %v243 = vpop.f32.mrf.mxu0
    %v244 = vpop.f32.mrf.mxu0
    %v245 = vadd.f32 0.0, %v244
    %v246 = vpop.f32.mrf.mxu0
    %247 = vmatprep.mubr.bf16.mxu0 0
    %248 = vmatmul.mubr.bf16.gmra.mxu0 %v102
    %v249 = vpop.f32.mrf.mxu0
    %v250 = vadd.f32 0.0, %v249
    %v251 = vpop.f32.mrf.mxu0
    %v252 = vpop.f32.mrf.mxu0
    %v253 = vadd.f32 0.0, %v252
    %v254 = vpop.f32.mrf.mxu0
    %255 = vdwg.mxu0
    %v256 = vpack.c.bf16 %v197, %v194
    %v257 = vpack.c.bf16 %v205, %v202
    %v258 = vpack.c.bf16 %v213, %v210
    %v259 = vpack.c.bf16 %v221, %v218
    %v260 = vpack.c.bf16 %v229, %v226
    %v261 = vpack.c.bf16 %v237, %v234
    %v262 = vpack.c.bf16 %v245, %v242
    %v263 = vpack.c.bf16 %v253, %v250
    %264 = vrot.lane.b32.xlu0 %v143, 32
    %v265 = vpop.permute.xlu0 %264
    %266 = vrot.lane.b32.xlu0 %v144, 32
    %v267 = vpop.permute.xlu0 %266
    %268 = vrot.lane.b32.xlu0 %v145, 32
    %v269 = vpop.permute.xlu0 %268
    %270 = vrot.lane.b32.xlu0 %v146, 32
    %v271 = vpop.permute.xlu0 %270
    %272 = vrot.lane.b32.xlu0 %v147, 32
    %v273 = vpop.permute.xlu0 %272
    %274 = vrot.lane.b32.xlu0 %v148, 32
    %v275 = vpop.permute.xlu0 %274
    %276 = vrot.lane.b32.xlu0 %v149, 32
    %v277 = vpop.permute.xlu0 %276
    %278 = vrot.lane.b32.xlu0 %v150, 32
    %v279 = vpop.permute.xlu0 %278
    %vm280 = vcmask 261120
    %v283 = vsel %vm280, %v256, %v265
    %v286 = vsel %vm280, %v257, %v267
    %v289 = vsel %vm280, %v258, %v269
    %v292 = vsel %vm280, %v259, %v271
    %v295 = vsel %vm280, %v260, %v273
    %v298 = vsel %vm280, %v261, %v275
    %v301 = vsel %vm280, %v262, %v277
    %v304 = vsel %vm280, %v263, %v279
    %v305 = vld [vmem:[%s2] sm:$0xf]
    %v306 = vld [vmem:[%s2 + $0x4] sm:$0xf]
    %v307 = vld [vmem:[%s2 + $0x8] sm:$0xf]
    %v308 = vld [vmem:[%s2 + $0xc] sm:$0xf]
    %v309 = vld [vmem:[%s2 + $0x10] sm:$0xf]
    %v310 = vld [vmem:[%s2 + $0x14] sm:$0xf]
    %v311 = vld [vmem:[%s2 + $0x18] sm:$0xf]
    %v312 = vld [vmem:[%s2 + $0x1c] sm:$0xf]
    %v313 = vld [vmem:[%s3] sm:$0x1]
    %v315 = vlaneseq
    %v316 = vshrl.u32 %v315, 7
    %v317 = vsub.s32 0, %v316
    %v318 = vrot.slane %v313, %v317
    %v328 = vunpack.c.l.b16 %v305
    %v329 = vunpack.c.l.b16 %v306
    %v330 = vunpack.c.l.b16 %v307
    %v331 = vunpack.c.l.b16 %v308
    %v332 = vunpack.c.l.b16 %v309
    %v333 = vunpack.c.l.b16 %v310
    %v334 = vunpack.c.l.b16 %v311
    %v335 = vunpack.c.l.b16 %v312
    %v336 = vpack.c.b16 %v329, %v328
    %v337 = vpack.c.b16 %v331, %v330
    %v338 = vpack.c.b16 %v333, %v332
    %v339 = vpack.c.b16 %v335, %v334
    %vm344 = vcmask 523264
    %v345 = vsel %vm344, %v283, 0
    %v347 = vsel %vm344, %v286, 0
    %v349 = vsel %vm344, %v289, 0
    %v351 = vsel %vm344, %v292, 0
    %v353 = vsel %vm344, %v295, 0
    %v355 = vsel %vm344, %v298, 0
    %v357 = vsel %vm344, %v301, 0
    %v359 = vsel %vm344, %v304, 0
    %361 = vmatprep.subr.bf16.mxu0 0
    %362 = vmatpush1.bf16.msra.mxu0 0
    %363 = vmatprep.subr.bf16.mxu0 0
    %364 = vmatpush1.bf16.msra.mxu0 0
    %365 = vmatprep.subr.bf16.mxu0 0
    %366 = vmatpush1.bf16.msra.mxu0 0
    %367 = vmatprep.subr.bf16.mxu0 0
    %368 = vmatpush1.bf16.msra.mxu0 0
    %369 = vmatprep.subr.bf16.mxu0 0
    %370 = vmatpush1.bf16.msra.mxu0 %v339
    %371 = vmatprep.subr.bf16.mxu0 0
    %372 = vmatpush1.bf16.msra.mxu0 %v338
    %373 = vmatprep.subr.bf16.mxu0 0
    %374 = vmatpush1.bf16.msra.mxu0 %v337
    %375 = vmatprep.subr.bf16.mxu0 0
    %376 = vmatpush1.bf16.msra.mxu0 %v336
    %377 = vmatprep.subr.bf16.mxu0 0
    %378 = vmatpush2.bf16.msra.mxu0 0
    %379 = vmatprep.subr.bf16.mxu0 0
    %380 = vmatpush2.bf16.msra.mxu0 0
    %381 = vmatprep.subr.bf16.mxu0 0
    %382 = vmatpush2.bf16.msra.mxu0 0
    %383 = vmatprep.subr.bf16.mxu0 0
    %384 = vmatpush2.bf16.msra.mxu0 0
    %385 = vmatprep.subr.bf16.mxu0 0
    %386 = vmatpush2.bf16.msra.mxu0 0
    %387 = vmatprep.subr.bf16.mxu0 0
    %388 = vmatpush2.bf16.msra.mxu0 0
    %389 = vmatprep.subr.bf16.mxu0 0
    %390 = vmatpush2.bf16.msra.mxu0 0
    %391 = vmatprep.subr.bf16.mxu0 0
    %392 = vmatpush2.bf16.msra.mxu0 0
    %393 = vmatprep.mubr.bf16.mxu0 0
    %394 = vmatmul.mubr.bf16.gmra.mxu0 %v345
    %v395 = vpop.f32.mrf.mxu0
    %v396 = vadd.f32 %v318, %v395
    %v397 = vpop.f32.mrf.mxu0
    %v398 = vpop.f32.mrf.mxu0
    %v399 = vadd.f32 %v318, %v398
    %v400 = vpop.f32.mrf.mxu0
    %401 = vmatprep.mubr.bf16.mxu0 0
    %402 = vmatmul.mubr.bf16.gmra.mxu0 %v347
    %v403 = vpop.f32.mrf.mxu0
    %v404 = vadd.f32 %v318, %v403
    %v405 = vpop.f32.mrf.mxu0
    %v406 = vpop.f32.mrf.mxu0
    %v407 = vadd.f32 %v318, %v406
    %v408 = vpop.f32.mrf.mxu0
    %409 = vmatprep.mubr.bf16.mxu0 0
    %410 = vmatmul.mubr.bf16.gmra.mxu0 %v349
    %v411 = vpop.f32.mrf.mxu0
    %v412 = vadd.f32 %v318, %v411
    %v413 = vpop.f32.mrf.mxu0
    %v414 = vpop.f32.mrf.mxu0
    %v415 = vadd.f32 %v318, %v414
    %v416 = vpop.f32.mrf.mxu0
    %417 = vmatprep.mubr.bf16.mxu0 0
    %418 = vmatmul.mubr.bf16.gmra.mxu0 %v351
    %v419 = vpop.f32.mrf.mxu0
    %v420 = vadd.f32 %v318, %v419
    %v421 = vpop.f32.mrf.mxu0
    %v422 = vpop.f32.mrf.mxu0
    %v423 = vadd.f32 %v318, %v422
    %v424 = vpop.f32.mrf.mxu0
    %425 = vmatprep.mubr.bf16.mxu0 0
    %426 = vmatmul.mubr.bf16.gmra.mxu0 %v353
    %v427 = vpop.f32.mrf.mxu0
    %v428 = vadd.f32 %v318, %v427
    %v429 = vpop.f32.mrf.mxu0
    %v430 = vpop.f32.mrf.mxu0
    %v431 = vadd.f32 %v318, %v430
    %v432 = vpop.f32.mrf.mxu0
    %433 = vmatprep.mubr.bf16.mxu0 0
    %434 = vmatmul.mubr.bf16.gmra.mxu0 %v355
    %v435 = vpop.f32.mrf.mxu0
    %v436 = vadd.f32 %v318, %v435
    %v437 = vpop.f32.mrf.mxu0
    %v438 = vpop.f32.mrf.mxu0
    %v439 = vadd.f32 %v318, %v438
    %v440 = vpop.f32.mrf.mxu0
    %441 = vmatprep.mubr.bf16.mxu0 0
    %442 = vmatmul.mubr.bf16.gmra.mxu0 %v357
    %v443 = vpop.f32.mrf.mxu0
    %v444 = vadd.f32 %v318, %v443
    %v445 = vpop.f32.mrf.mxu0
    %v446 = vpop.f32.mrf.mxu0
    %v447 = vadd.f32 %v318, %v446
    %v448 = vpop.f32.mrf.mxu0
    %449 = vmatprep.mubr.bf16.mxu0 0
    %450 = vmatmul.mubr.bf16.gmra.mxu0 %v359
    %v451 = vpop.f32.mrf.mxu0
    %v452 = vadd.f32 %v318, %v451
    %v453 = vpop.f32.mrf.mxu0
    %v454 = vpop.f32.mrf.mxu0
    %v455 = vadd.f32 %v318, %v454
    %v456 = vpop.f32.mrf.mxu0
    %457 = vdwg.mxu0
    %v458 = vmax.f32 %v396, 0.0
    %v459 = vmax.f32 %v399, 0.0
    %v460 = vmax.f32 %v404, 0.0
    %v461 = vmax.f32 %v407, 0.0
    %v462 = vmax.f32 %v412, 0.0
    %v463 = vmax.f32 %v415, 0.0
    %v464 = vmax.f32 %v420, 0.0
    %v465 = vmax.f32 %v423, 0.0
    %v466 = vmax.f32 %v428, 0.0
    %v467 = vmax.f32 %v431, 0.0
    %v468 = vmax.f32 %v436, 0.0
    %v469 = vmax.f32 %v439, 0.0
    %v470 = vmax.f32 %v444, 0.0
    %v471 = vmax.f32 %v447, 0.0
    %v472 = vmax.f32 %v452, 0.0
    %v473 = vmax.f32 %v455, 0.0
    %v474 = vpack.c.bf16 %v459, %v458
    %v475 = vpack.c.bf16 %v461, %v460
    %v476 = vpack.c.bf16 %v463, %v462
    %v477 = vpack.c.bf16 %v465, %v464
    %v478 = vpack.c.bf16 %v467, %v466
    %v479 = vpack.c.bf16 %v469, %v468
    %v480 = vpack.c.bf16 %v471, %v470
    %v481 = vpack.c.bf16 %v473, %v472
    %482 = vmatprep.subr.bf16.mxu0 0
    %483 = vmatpush1.bf16.msra.mxu0 %v481
    %484 = vmatprep.subr.bf16.mxu0 0
    %485 = vmatpush1.bf16.msra.mxu0 %v480
    %486 = vmatprep.subr.bf16.mxu0 0
    %487 = vmatpush1.bf16.msra.mxu0 %v479
    %488 = vmatprep.subr.bf16.mxu0 0
    %489 = vmatpush1.bf16.msra.mxu0 %v478
    %490 = vmatprep.subr.bf16.mxu0 0
    %491 = vmatpush1.bf16.msra.mxu0 %v477
    %492 = vmatprep.subr.bf16.mxu0 0
    %493 = vmatpush1.bf16.msra.mxu0 %v476
    %494 = vmatprep.subr.bf16.mxu0 0
    %495 = vmatpush1.bf16.msra.mxu0 %v475
    %496 = vmatprep.subr.bf16.mxu0 0
    %497 = vmatpush1.bf16.msra.mxu0 %v474
    %498 = vmatprep.subr.bf16.mxu0 0
    %499 = vmatpush2.bf16.msra.mxu0 0
    %500 = vmatprep.subr.bf16.mxu0 0
    %501 = vmatpush2.bf16.msra.mxu0 0
    %502 = vmatprep.subr.bf16.mxu0 0
    %503 = vmatpush2.bf16.msra.mxu0 0
    %504 = vmatprep.subr.bf16.mxu0 0
    %505 = vmatpush2.bf16.msra.mxu0 0
    %506 = vmatprep.subr.bf16.mxu0 0
    %507 = vmatpush2.bf16.msra.mxu0 0
    %508 = vmatprep.subr.bf16.mxu0 0
    %509 = vmatpush2.bf16.msra.mxu0 0
    %510 = vmatprep.subr.bf16.mxu0 0
    %511 = vmatpush2.bf16.msra.mxu0 0
    %512 = vmatprep.subr.bf16.mxu0 0
    %513 = vmatpush2.bf16.msra.mxu0 0
    %514 = vmatprep.mubr.bf16.mxu0 0
    %515 = vmatmul.mubr.bf16.gmra.mxu0 %v95
    %v516 = vpop.f32.mrf.mxu0
    %v517 = vadd.f32 0.0, %v516
    %v518 = vpop.f32.mrf.mxu0
    %v519 = vpop.f32.mrf.mxu0
    %v520 = vadd.f32 0.0, %v519
    %v521 = vpop.f32.mrf.mxu0
    %522 = vmatprep.mubr.bf16.mxu0 0
    %523 = vmatmul.mubr.bf16.gmra.mxu0 %v96
    %v524 = vpop.f32.mrf.mxu0
    %v525 = vadd.f32 0.0, %v524
    %v526 = vpop.f32.mrf.mxu0
    %v527 = vpop.f32.mrf.mxu0
    %v528 = vadd.f32 0.0, %v527
    %v529 = vpop.f32.mrf.mxu0
    %530 = vmatprep.mubr.bf16.mxu0 0
    %531 = vmatmul.mubr.bf16.gmra.mxu0 %v97
    %v532 = vpop.f32.mrf.mxu0
    %v533 = vadd.f32 0.0, %v532
    %v534 = vpop.f32.mrf.mxu0
    %v535 = vpop.f32.mrf.mxu0
    %v536 = vadd.f32 0.0, %v535
    %v537 = vpop.f32.mrf.mxu0
    %538 = vmatprep.mubr.bf16.mxu0 0
    %539 = vmatmul.mubr.bf16.gmra.mxu0 %v98
    %v540 = vpop.f32.mrf.mxu0
    %v541 = vadd.f32 0.0, %v540
    %v542 = vpop.f32.mrf.mxu0
    %v543 = vpop.f32.mrf.mxu0
    %v544 = vadd.f32 0.0, %v543
    %v545 = vpop.f32.mrf.mxu0
    %546 = vmatprep.mubr.bf16.mxu0 0
    %547 = vmatmul.mubr.bf16.gmra.mxu0 %v99
    %v548 = vpop.f32.mrf.mxu0
    %v549 = vadd.f32 0.0, %v548
    %v550 = vpop.f32.mrf.mxu0
    %v551 = vpop.f32.mrf.mxu0
    %v552 = vadd.f32 0.0, %v551
    %v553 = vpop.f32.mrf.mxu0
    %554 = vmatprep.mubr.bf16.mxu0 0
    %555 = vmatmul.mubr.bf16.gmra.mxu0 %v100
    %v556 = vpop.f32.mrf.mxu0
    %v557 = vadd.f32 0.0, %v556
    %v558 = vpop.f32.mrf.mxu0
    %v559 = vpop.f32.mrf.mxu0
    %v560 = vadd.f32 0.0, %v559
    %v561 = vpop.f32.mrf.mxu0
    %562 = vmatprep.mubr.bf16.mxu0 0
    %563 = vmatmul.mubr.bf16.gmra.mxu0 %v101
    %v564 = vpop.f32.mrf.mxu0
    %v565 = vadd.f32 0.0, %v564
    %v566 = vpop.f32.mrf.mxu0
    %v567 = vpop.f32.mrf.mxu0
    %v568 = vadd.f32 0.0, %v567
    %v569 = vpop.f32.mrf.mxu0
    %570 = vmatprep.mubr.bf16.mxu0 0
    %571 = vmatmul.mubr.bf16.gmra.mxu0 %v102
    %v572 = vpop.f32.mrf.mxu0
    %v573 = vadd.f32 0.0, %v572
    %v574 = vpop.f32.mrf.mxu0
    %v575 = vpop.f32.mrf.mxu0
    %v576 = vadd.f32 0.0, %v575
    %v577 = vpop.f32.mrf.mxu0
    %578 = vdwg.mxu0
    %v579 = vpack.c.bf16 %v520, %v517
    %v580 = vpack.c.bf16 %v528, %v525
    %v581 = vpack.c.bf16 %v536, %v533
    %v582 = vpack.c.bf16 %v544, %v541
    %v583 = vpack.c.bf16 %v552, %v549
    %v584 = vpack.c.bf16 %v560, %v557
    %v585 = vpack.c.bf16 %v568, %v565
    %v586 = vpack.c.bf16 %v576, %v573
    %595 = vrot.lane.b32.xlu0 %v474, 64
    %v596 = vpop.permute.xlu0 %595
    %597 = vrot.lane.b32.xlu0 %v475, 64
    %v598 = vpop.permute.xlu0 %597
    %599 = vrot.lane.b32.xlu0 %v476, 64
    %v600 = vpop.permute.xlu0 %599
    %601 = vrot.lane.b32.xlu0 %v477, 64
    %v602 = vpop.permute.xlu0 %601
    %603 = vrot.lane.b32.xlu0 %v478, 64
    %v604 = vpop.permute.xlu0 %603
    %605 = vrot.lane.b32.xlu0 %v479, 64
    %v606 = vpop.permute.xlu0 %605
    %607 = vrot.lane.b32.xlu0 %v480, 64
    %v608 = vpop.permute.xlu0 %607
    %609 = vrot.lane.b32.xlu0 %v481, 64
    %v610 = vpop.permute.xlu0 %609
    %v613 = vsel %vm344, %v579, %v596
    %v617 = vsel %vm344, %v580, %v598
    %v621 = vsel %vm344, %v581, %v600
    %v625 = vsel %vm344, %v582, %v602
    %v629 = vsel %vm344, %v583, %v604
    %v633 = vsel %vm344, %v584, %v606
    %v637 = vsel %vm344, %v585, %v608
    %v641 = vsel %vm344, %v586, %v610
    %v643 = vld [vmem:[%s4] sm:$0xf]
    %v644 = vld [vmem:[%s4 + $0x4] sm:$0xf]
    %v645 = vld [vmem:[%s4 + $0x8] sm:$0xf]
    %v646 = vld [vmem:[%s4 + $0xc] sm:$0xf]
    %v647 = vld [vmem:[%s4 + $0x10] sm:$0xf]
    %v648 = vld [vmem:[%s4 + $0x14] sm:$0xf]
    %v649 = vld [vmem:[%s4 + $0x18] sm:$0xf]
    %v650 = vld [vmem:[%s4 + $0x1c] sm:$0xf]
    %v651 = vld [vmem:[%s4 + $0x20] sm:$0xf]
    %v652 = vld [vmem:[%s4 + $0x24] sm:$0xf]
    %v653 = vld [vmem:[%s4 + $0x28] sm:$0xf]
    %v654 = vld [vmem:[%s4 + $0x2c] sm:$0xf]
    %v655 = vld [vmem:[%s4 + $0x30] sm:$0xf]
    %v656 = vld [vmem:[%s4 + $0x34] sm:$0xf]
    %v657 = vld [vmem:[%s4 + $0x38] sm:$0xf]
    %v658 = vld [vmem:[%s4 + $0x3c] sm:$0xf]
    %v659 = vld [vmem:[%s5] sm:$0x1]
    %v661 = vlaneseq
    %v662 = vshrl.u32 %v661, 7
    %v663 = vsub.s32 0, %v662
    %v664 = vrot.slane %v659, %v663
    %v682 = vunpack.c.l.b16 %v643
    %v683 = vunpack.c.l.b16 %v644
    %v684 = vunpack.c.l.b16 %v645
    %v685 = vunpack.c.l.b16 %v646
    %v686 = vunpack.c.l.b16 %v647
    %v687 = vunpack.c.l.b16 %v648
    %v688 = vunpack.c.l.b16 %v649
    %v689 = vunpack.c.l.b16 %v650
    %v690 = vunpack.c.l.b16 %v651
    %v691 = vunpack.c.l.b16 %v652
    %v692 = vunpack.c.l.b16 %v653
    %v693 = vunpack.c.l.b16 %v654
    %v694 = vunpack.c.l.b16 %v655
    %v695 = vunpack.c.l.b16 %v656
    %v696 = vunpack.c.l.b16 %v657
    %v697 = vunpack.c.l.b16 %v658
    %v698 = vpack.c.b16 %v683, %v682
    %v699 = vpack.c.b16 %v685, %v684
    %v700 = vpack.c.b16 %v687, %v686
    %v701 = vpack.c.b16 %v689, %v688
    %v702 = vpack.c.b16 %v691, %v690
    %v703 = vpack.c.b16 %v693, %v692
    %v704 = vpack.c.b16 %v695, %v694
    %v705 = vpack.c.b16 %v697, %v696
    %714 = vmatprep.subr.bf16.mxu0 0
    %715 = vmatpush1.bf16.msra.mxu0 %v705
    %716 = vmatprep.subr.bf16.mxu0 0
    %717 = vmatpush1.bf16.msra.mxu0 %v704
    %718 = vmatprep.subr.bf16.mxu0 0
    %719 = vmatpush1.bf16.msra.mxu0 %v703
    %720 = vmatprep.subr.bf16.mxu0 0
    %721 = vmatpush1.bf16.msra.mxu0 %v702
    %722 = vmatprep.subr.bf16.mxu0 0
    %723 = vmatpush1.bf16.msra.mxu0 %v701
    %724 = vmatprep.subr.bf16.mxu0 0
    %725 = vmatpush1.bf16.msra.mxu0 %v700
    %726 = vmatprep.subr.bf16.mxu0 0
    %727 = vmatpush1.bf16.msra.mxu0 %v699
    %728 = vmatprep.subr.bf16.mxu0 0
    %729 = vmatpush1.bf16.msra.mxu0 %v698
    %730 = vmatprep.subr.bf16.mxu0 0
    %731 = vmatpush2.bf16.msra.mxu0 0
    %732 = vmatprep.subr.bf16.mxu0 0
    %733 = vmatpush2.bf16.msra.mxu0 0
    %734 = vmatprep.subr.bf16.mxu0 0
    %735 = vmatpush2.bf16.msra.mxu0 0
    %736 = vmatprep.subr.bf16.mxu0 0
    %737 = vmatpush2.bf16.msra.mxu0 0
    %738 = vmatprep.subr.bf16.mxu0 0
    %739 = vmatpush2.bf16.msra.mxu0 0
    %740 = vmatprep.subr.bf16.mxu0 0
    %741 = vmatpush2.bf16.msra.mxu0 0
    %742 = vmatprep.subr.bf16.mxu0 0
    %743 = vmatpush2.bf16.msra.mxu0 0
    %744 = vmatprep.subr.bf16.mxu0 0
    %745 = vmatpush2.bf16.msra.mxu0 0
    %746 = vmatprep.mubr.bf16.mxu0 0
    %747 = vmatmul.mubr.bf16.gmra.mxu0 %v613
    %v748 = vpop.f32.mrf.mxu0
    %v749 = vadd.f32 %v664, %v748
    %v750 = vpop.f32.mrf.mxu0
    %v751 = vpop.f32.mrf.mxu0
    %v752 = vadd.f32 %v664, %v751
    %v753 = vpop.f32.mrf.mxu0
    %754 = vmatprep.mubr.bf16.mxu0 0
    %755 = vmatmul.mubr.bf16.gmra.mxu0 %v617
    %v756 = vpop.f32.mrf.mxu0
    %v757 = vadd.f32 %v664, %v756
    %v758 = vpop.f32.mrf.mxu0
    %v759 = vpop.f32.mrf.mxu0
    %v760 = vadd.f32 %v664, %v759
    %v761 = vpop.f32.mrf.mxu0
    %762 = vmatprep.mubr.bf16.mxu0 0
    %763 = vmatmul.mubr.bf16.gmra.mxu0 %v621
    %v764 = vpop.f32.mrf.mxu0
    %v765 = vadd.f32 %v664, %v764
    %v766 = vpop.f32.mrf.mxu0
    %v767 = vpop.f32.mrf.mxu0
    %v768 = vadd.f32 %v664, %v767
    %v769 = vpop.f32.mrf.mxu0
    %770 = vmatprep.mubr.bf16.mxu0 0
    %771 = vmatmul.mubr.bf16.gmra.mxu0 %v625
    %v772 = vpop.f32.mrf.mxu0
    %v773 = vadd.f32 %v664, %v772
    %v774 = vpop.f32.mrf.mxu0
    %v775 = vpop.f32.mrf.mxu0
    %v776 = vadd.f32 %v664, %v775
    %v777 = vpop.f32.mrf.mxu0
    %778 = vmatprep.mubr.bf16.mxu0 0
    %779 = vmatmul.mubr.bf16.gmra.mxu0 %v629
    %v780 = vpop.f32.mrf.mxu0
    %v781 = vadd.f32 %v664, %v780
    %v782 = vpop.f32.mrf.mxu0
    %v783 = vpop.f32.mrf.mxu0
    %v784 = vadd.f32 %v664, %v783
    %v785 = vpop.f32.mrf.mxu0
    %786 = vmatprep.mubr.bf16.mxu0 0
    %787 = vmatmul.mubr.bf16.gmra.mxu0 %v633
    %v788 = vpop.f32.mrf.mxu0
    %v789 = vadd.f32 %v664, %v788
    %v790 = vpop.f32.mrf.mxu0
    %v791 = vpop.f32.mrf.mxu0
    %v792 = vadd.f32 %v664, %v791
    %v793 = vpop.f32.mrf.mxu0
    %794 = vmatprep.mubr.bf16.mxu0 0
    %795 = vmatmul.mubr.bf16.gmra.mxu0 %v637
    %v796 = vpop.f32.mrf.mxu0
    %v797 = vadd.f32 %v664, %v796
    %v798 = vpop.f32.mrf.mxu0
    %v799 = vpop.f32.mrf.mxu0
    %v800 = vadd.f32 %v664, %v799
    %v801 = vpop.f32.mrf.mxu0
    %802 = vmatprep.mubr.bf16.mxu0 0
    %803 = vmatmul.mubr.bf16.gmra.mxu0 %v641
    %v804 = vpop.f32.mrf.mxu0
    %v805 = vadd.f32 %v664, %v804
    %v806 = vpop.f32.mrf.mxu0
    %v807 = vpop.f32.mrf.mxu0
    %v808 = vadd.f32 %v664, %v807
    %v809 = vpop.f32.mrf.mxu0
    %810 = vdwg.mxu0
    %v811 = vpack.c.bf16 %v752, %v749
    %v812 = vpack.c.bf16 %v760, %v757
    %v813 = vpack.c.bf16 %v768, %v765
    %v814 = vpack.c.bf16 %v776, %v773
    %v815 = vpack.c.bf16 %v784, %v781
    %v816 = vpack.c.bf16 %v792, %v789
    %v817 = vpack.c.bf16 %v800, %v797
    %v818 = vpack.c.bf16 %v808, %v805
    %v819 = vld [vmem:[%s6] sm:$0xf]
    %v820 = vld [vmem:[%s6 + $0x4] sm:$0xf]
    %v821 = vld [vmem:[%s6 + $0x8] sm:$0xf]
    %v822 = vld [vmem:[%s6 + $0xc] sm:$0xf]
    %v823 = vld [vmem:[%s6 + $0x10] sm:$0xf]
    %v824 = vld [vmem:[%s6 + $0x14] sm:$0xf]
    %v825 = vld [vmem:[%s6 + $0x18] sm:$0xf]
    %v826 = vld [vmem:[%s6 + $0x1c] sm:$0xf]
    %v827 = vld [vmem:[%s7] sm:$0x1]
    %v829 = vlaneseq
    %v830 = vshrl.u32 %v829, 7
    %v831 = vsub.s32 0, %v830
    %v832 = vrot.slane %v827, %v831
    %v842 = vunpack.c.l.b16 %v819
    %v843 = vunpack.c.l.b16 %v820
    %v844 = vunpack.c.l.b16 %v821
    %v845 = vunpack.c.l.b16 %v822
    %v846 = vunpack.c.l.b16 %v823
    %v847 = vunpack.c.l.b16 %v824
    %v848 = vunpack.c.l.b16 %v825
    %v849 = vunpack.c.l.b16 %v826
    %v850 = vpack.c.b16 %v843, %v842
    %v851 = vpack.c.b16 %v845, %v844
    %v852 = vpack.c.b16 %v847, %v846
    %v853 = vpack.c.b16 %v849, %v848
    %v859 = vsel %vm344, %v811, 0
    %v862 = vsel %vm344, %v812, 0
    %v865 = vsel %vm344, %v813, 0
    %v868 = vsel %vm344, %v814, 0
    %v871 = vsel %vm344, %v815, 0
    %v874 = vsel %vm344, %v816, 0
    %v877 = vsel %vm344, %v817, 0
    %v880 = vsel %vm344, %v818, 0
    %882 = vmatprep.subr.bf16.mxu0 0
    %883 = vmatpush1.bf16.msra.mxu0 0
    %884 = vmatprep.subr.bf16.mxu0 0
    %885 = vmatpush1.bf16.msra.mxu0 0
    %886 = vmatprep.subr.bf16.mxu0 0
    %887 = vmatpush1.bf16.msra.mxu0 0
    %888 = vmatprep.subr.bf16.mxu0 0
    %889 = vmatpush1.bf16.msra.mxu0 0
    %890 = vmatprep.subr.bf16.mxu0 0
    %891 = vmatpush1.bf16.msra.mxu0 %v853
    %892 = vmatprep.subr.bf16.mxu0 0
    %893 = vmatpush1.bf16.msra.mxu0 %v852
    %894 = vmatprep.subr.bf16.mxu0 0
    %895 = vmatpush1.bf16.msra.mxu0 %v851
    %896 = vmatprep.subr.bf16.mxu0 0
    %897 = vmatpush1.bf16.msra.mxu0 %v850
    %898 = vmatprep.subr.bf16.mxu0 0
    %899 = vmatpush2.bf16.msra.mxu0 0
    %900 = vmatprep.subr.bf16.mxu0 0
    %901 = vmatpush2.bf16.msra.mxu0 0
    %902 = vmatprep.subr.bf16.mxu0 0
    %903 = vmatpush2.bf16.msra.mxu0 0
    %904 = vmatprep.subr.bf16.mxu0 0
    %905 = vmatpush2.bf16.msra.mxu0 0
    %906 = vmatprep.subr.bf16.mxu0 0
    %907 = vmatpush2.bf16.msra.mxu0 0
    %908 = vmatprep.subr.bf16.mxu0 0
    %909 = vmatpush2.bf16.msra.mxu0 0
    %910 = vmatprep.subr.bf16.mxu0 0
    %911 = vmatpush2.bf16.msra.mxu0 0
    %912 = vmatprep.subr.bf16.mxu0 0
    %913 = vmatpush2.bf16.msra.mxu0 0
    %914 = vmatprep.mubr.bf16.mxu0 0
    %915 = vmatmul.mubr.bf16.gmra.mxu0 %v859
    %v916 = vpop.f32.mrf.mxu0
    %v917 = vadd.f32 %v832, %v916
    %v918 = vpop.f32.mrf.mxu0
    %v919 = vpop.f32.mrf.mxu0
    %v920 = vadd.f32 %v832, %v919
    %v921 = vpop.f32.mrf.mxu0
    %922 = vmatprep.mubr.bf16.mxu0 0
    %923 = vmatmul.mubr.bf16.gmra.mxu0 %v862
    %v924 = vpop.f32.mrf.mxu0
    %v925 = vadd.f32 %v832, %v924
    %v926 = vpop.f32.mrf.mxu0
    %v927 = vpop.f32.mrf.mxu0
    %v928 = vadd.f32 %v832, %v927
    %v929 = vpop.f32.mrf.mxu0
    %930 = vmatprep.mubr.bf16.mxu0 0
    %931 = vmatmul.mubr.bf16.gmra.mxu0 %v865
    %v932 = vpop.f32.mrf.mxu0
    %v933 = vadd.f32 %v832, %v932
    %v934 = vpop.f32.mrf.mxu0
    %v935 = vpop.f32.mrf.mxu0
    %v936 = vadd.f32 %v832, %v935
    %v937 = vpop.f32.mrf.mxu0
    %938 = vmatprep.mubr.bf16.mxu0 0
    %939 = vmatmul.mubr.bf16.gmra.mxu0 %v868
    %v940 = vpop.f32.mrf.mxu0
    %v941 = vadd.f32 %v832, %v940
    %v942 = vpop.f32.mrf.mxu0
    %v943 = vpop.f32.mrf.mxu0
    %v944 = vadd.f32 %v832, %v943
    %v945 = vpop.f32.mrf.mxu0
    %946 = vmatprep.mubr.bf16.mxu0 0
    %947 = vmatmul.mubr.bf16.gmra.mxu0 %v871
    %v948 = vpop.f32.mrf.mxu0
    %v949 = vadd.f32 %v832, %v948
    %v950 = vpop.f32.mrf.mxu0
    %v951 = vpop.f32.mrf.mxu0
    %v952 = vadd.f32 %v832, %v951
    %v953 = vpop.f32.mrf.mxu0
    %954 = vmatprep.mubr.bf16.mxu0 0
    %955 = vmatmul.mubr.bf16.gmra.mxu0 %v874
    %v956 = vpop.f32.mrf.mxu0
    %v957 = vadd.f32 %v832, %v956
    %v958 = vpop.f32.mrf.mxu0
    %v959 = vpop.f32.mrf.mxu0
    %v960 = vadd.f32 %v832, %v959
    %v961 = vpop.f32.mrf.mxu0
    %962 = vmatprep.mubr.bf16.mxu0 0
    %963 = vmatmul.mubr.bf16.gmra.mxu0 %v877
    %v964 = vpop.f32.mrf.mxu0
    %v965 = vadd.f32 %v832, %v964
    %v966 = vpop.f32.mrf.mxu0
    %v967 = vpop.f32.mrf.mxu0
    %v968 = vadd.f32 %v832, %v967
    %v969 = vpop.f32.mrf.mxu0
    %970 = vmatprep.mubr.bf16.mxu0 0
    %971 = vmatmul.mubr.bf16.gmra.mxu0 %v880
    %v972 = vpop.f32.mrf.mxu0
    %v973 = vadd.f32 %v832, %v972
    %v974 = vpop.f32.mrf.mxu0
    %v975 = vpop.f32.mrf.mxu0
    %v976 = vadd.f32 %v832, %v975
    %v977 = vpop.f32.mrf.mxu0
    %978 = vdwg.mxu0
    %979 = vst [vmem:[#allocation2] sm:$0xff] %v917
    %980 = vst [vmem:[#allocation2 + $0x8] sm:$0xff] %v920
    %981 = vst [vmem:[#allocation2 + $0x10] sm:$0xff] %v925
    %982 = vst [vmem:[#allocation2 + $0x18] sm:$0xff] %v928
    %983 = vst [vmem:[#allocation2 + $0x20] sm:$0xff] %v933
    %984 = vst [vmem:[#allocation2 + $0x28] sm:$0xff] %v936
    %985 = vst [vmem:[#allocation2 + $0x30] sm:$0xff] %v941
    %986 = vst [vmem:[#allocation2 + $0x38] sm:$0xff] %v944
    %987 = vst [vmem:[#allocation2 + $0x40] sm:$0xff] %v949
    %988 = vst [vmem:[#allocation2 + $0x48] sm:$0xff] %v952
    %989 = vst [vmem:[#allocation2 + $0x50] sm:$0xff] %v957
    %990 = vst [vmem:[#allocation2 + $0x58] sm:$0xff] %v960
    %991 = vst [vmem:[#allocation2 + $0x60] sm:$0xff] %v965
    %992 = vst [vmem:[#allocation2 + $0x68] sm:$0xff] %v968
    %993 = vst [vmem:[#allocation2 + $0x70] sm:$0xff] %v973
    %994 = vst [vmem:[#allocation2 + $0x78] sm:$0xff] %v976
    // Predicated region
    $region34: #{tpu_custom_call.1} parent=1 // pred_check
      _
    $region35: #{tpu_custom_call.1} parent=1 // pred_check_branch
      %996 = sbr.rel (0) target = $region37
    $region36: #{tpu_custom_call.1} parent=1 // pred_region
      %s998 = ssub.s32 2048, 2048
      %999 = vsyncadd [#allocation3], %s998
      %s1000 = sshll.u32 [#allocation2], 4
      %s1001 = int_to_ptr.vmem [resolvable:$true] %s1000
      %1006 = dma.vmem_to_hbm [thread:$0]  %s1001, 2048, %s8, [#allocation3], 128, 128, 8
    $region37: #{tpu_custom_call.1} parent=1 // pred_fallthru
      _
    // Predicated region
    $region38: #{tpu_custom_call.1} parent=1 // pred_check
      _
    $region39: #{tpu_custom_call.1} parent=1 // pred_check_branch
      %1008 = sbr.rel (0) target = $region41
    $region40: #{tpu_custom_call.1} parent=1 // pred_region
      %1009 = dma.done [#allocation3], 2048
    $region41: #{tpu_custom_call.1} parent=1 // pred_fallthru
      _
    %1010 = vsyncpa [#allocation3], 1

</llo_original>
